<compile_context>
chip_gen: v7x
topology: tpu7x:2x2x1
jax: 0.10.0
libtpu: 0.0.40
codegen_flags: <defaults>
</compile_context>

<pallas_src>
import jax
import jax.numpy as jnp
from jax.experimental import pallas as pl
from jax.experimental.pallas import tpu as pltpu


def _attention_kernel(x_ref, w1t_ref, b1_ref, w2l_ref, o_ref):
    # x_ref:   (TB, T, C)  tile of batch rows
    # w1t_ref: (C, C)      linear1 weight, transposed to (in, out)
    # b1_ref:  (1, 1, C)   linear1 bias
    # w2l_ref: (1, 1, C)   linear2 weight row, pre-scaled by lambda_weight
    # o_ref:   (TB, C)     output tile
    TB, T, C = x_ref.shape
    x = x_ref[...]                                            # (TB, T, C)

    # linear1 as a single big-M MXU matmul over the fused (TB*T, C) view.
    h = jnp.dot(x.reshape(TB * T, C), w1t_ref[...],
                preferred_element_type=jnp.float32)           # (TB*T, C)
    h = jnp.tanh(h.reshape(TB, T, C) + b1_ref[...])           # (TB, T, C)

    # linear2 scores on the VPU: broadcast (1,1,C) weight, reduce over C.
    # (b2 is omitted: softmax is shift-invariant; lambda already folded in.)
    s = jnp.sum(h * w2l_ref[...], axis=-1)                    # (TB, T) lane-dense

    # softmax over T (last / lane axis)
    m = jnp.max(s, axis=-1, keepdims=True)                    # (TB, 1)
    p = jnp.exp(s - m)                                        # (TB, T)
    denom = jnp.sum(p, axis=-1, keepdims=True)                # (TB, 1)
    a = p * pl.reciprocal(denom, approx=True)                 # (TB, T)

    # weighted sum over T on the VPU/XLU: (TB,T,1) * (TB,T,C) -> sum over T.
    o_ref[...] = jnp.sum(a[..., None] * x, axis=1)            # (TB, C)


def attention_forward(x, w1, b1, w2, b2=None, lambda_weight=0.8, block_b=1024):
    """x: (B, T, C) float32.  w1: (C, C), b1: (C,), w2: (1, C), b2: (1,).

    Weights follow PyTorch nn.Linear convention (out_features, in_features).
    b2 is accepted for API parity but is mathematically a no-op (softmax
    shift-invariance); lambda_weight is folded into w2 in the wrapper.
    """
    x = jnp.asarray(x, jnp.float32)
    B, T, C = x.shape

    w1t = jnp.asarray(w1, jnp.float32).T                      # (C, C) in->out
    b1r = jnp.asarray(b1, jnp.float32).reshape(1, 1, C)       # (1, 1, C)
    w2l = (jnp.asarray(w2, jnp.float32)
           * jnp.float32(lambda_weight)).reshape(1, 1, C)     # (1, 1, C)

    # Choose a batch tile: as many rows per grid step as allowed (fewer, fatter
    # steps); keep it a multiple of 8 when tiling so the output block obeys the
    # (8, 128) sublane/lane rule, and pad B up to a multiple of the tile.
    TB = min(int(block_b), B)
    if TB < B:
        TB = max(8, (TB // 8) * 8)
    Bp = ((B + TB - 1) // TB) * TB
    if Bp != B:
        x = jnp.pad(x, ((0, Bp - B), (0, 0), (0, 0)))         # pad rows -> sliced off

    out = pl.pallas_call(
        _attention_kernel,
        out_shape=jax.ShapeDtypeStruct((Bp, C), jnp.float32),
        grid_spec=pltpu.PrefetchScalarGridSpec(
            num_scalar_prefetch=0,
            grid=(Bp // TB,),
            in_specs=[
                pl.BlockSpec((TB, T, C), lambda b: (b, 0, 0)),   # x tile
                pl.BlockSpec((C, C), lambda b: (0, 0)),          # w1^T (replicated)
                pl.BlockSpec((1, 1, C), lambda b: (0, 0, 0)),    # b1
                pl.BlockSpec((1, 1, C), lambda b: (0, 0, 0)),    # lambda * w2
            ],
            out_specs=pl.BlockSpec((TB, C), lambda b: (b, 0)),
        ),
        compiler_params=pltpu.CompilerParams(
            dimension_semantics=("parallel",),
        ),
    )(x, w1t, b1r, w2l)
    return out[:B]


def attention_reference(x, w1, b1, w2, b2, lambda_weight=0.8):
    """Pure-JAX reference matching the PyTorch forward exactly."""
    v = jnp.tanh(jnp.einsum("btc,oc->bto", x, w1) + b1)       # (B, T, C)
    s = jnp.einsum("btc,oc->bto", v, w2) + b2                 # (B, T, 1)
    s = s[..., 0] * lambda_weight                             # (B, T)
    a = jax.nn.softmax(s, axis=1)[..., None]                  # (B, T, 1)
    return jnp.sum(x * a, axis=1)                             # (B, C)


if __name__ == "__main__":
    # Module default: n_channels=16, lambda_weight=0.8
    T, C = 8, 16
    lambda_weight = 0.8

    key = jax.random.PRNGKey(0)
    kx, kw1, kb1, kw2, kb2 = jax.random.split(key, 5)

    # nn.Linear-shaped params: (out_features, in_features)
    w1 = jax.random.normal(kw1, (C, C), dtype=jnp.float32) * 0.1
    b1 = jax.random.normal(kb1, (C,), dtype=jnp.float32) * 0.1
    w2 = jax.random.normal(kw2, (1, C), dtype=jnp.float32) * 0.1
    b2 = jax.random.normal(kb2, (1,), dtype=jnp.float32) * 0.1

    # Small demo shape (single grid step, TB == B).
    B = 2
    x = jax.random.normal(kx, (B, T, C), dtype=jnp.float32)
    out = jax.block_until_ready(
        attention_forward(x, w1, b1, w2, b2, lambda_weight))
    ref = attention_reference(x, w1, b1, w2, b2, lambda_weight)
    assert out.shape == (B, C)
    assert jnp.allclose(out, ref, atol=2e-3, rtol=2e-3), (out, ref)

    # Exercise the batched-tile path (grid > 1, padded B, TB multiple of 8).
    B2 = 100
    x2 = jax.random.normal(kx, (B2, T, C), dtype=jnp.float32)
    out2 = jax.block_until_ready(
        attention_forward(x2, w1, b1, w2, b2, lambda_weight, block_b=32))
    ref2 = attention_reference(x2, w1, b1, w2, b2, lambda_weight)
    assert out2.shape == (B2, C)
    assert jnp.allclose(out2, ref2, atol=2e-3, rtol=2e-3), (out2, ref2)

    print("KERNEL_OK")
</pallas_src>

<mosaic_0001>
module attributes {stable_mosaic.version = 11 : i64} {
  func.func @_attention_kernel(%arg0: i32, %arg1: memref<2x8x16xf32, #tpu.memory_space<vmem>>, %arg2: memref<16x16xf32, #tpu.memory_space<vmem>>, %arg3: memref<1x1x16xf32, #tpu.memory_space<vmem>>, %arg4: memref<1x1x16xf32, #tpu.memory_space<vmem>>, %arg5: memref<2x16xf32, #tpu.memory_space<vmem>>) attributes {dimension_semantics = [#tpu.dimension_semantics<parallel>], iteration_bounds = array<i64: 1>, scalar_prefetch = 0 : i64, scratch_operands = 0 : i64, tpu.core_type = #tpu.core_type<tc>, window_params = [{transform_indices = @transform_0, window_bounds = array<i64: 2, 8, 16>}, {pipeline_mode = #tpu.pipeline_mode<synchronous>, transform_indices = @transform_1, window_bounds = array<i64: 16, 16>}, {pipeline_mode = #tpu.pipeline_mode<synchronous>, transform_indices = @transform_2, window_bounds = array<i64: 1, 1, 16>}, {pipeline_mode = #tpu.pipeline_mode<synchronous>, transform_indices = @transform_3, window_bounds = array<i64: 1, 1, 16>}, {transform_indices = @transform_4, window_bounds = array<i64: 2, 16>}]} {
    %c0 = arith.constant 0 : index
    %c0_0 = arith.constant 0 : index
    %c0_1 = arith.constant 0 : index
    %0 = vector.load %arg1[%c0, %c0_0, %c0_1] : memref<2x8x16xf32, #tpu.memory_space<vmem>>, vector<2x8x16xf32>
    %1 = vector.shape_cast %0 : vector<2x8x16xf32> to vector<16x16xf32>
    %c0_2 = arith.constant 0 : index
    %c0_3 = arith.constant 0 : index
    %2 = vector.load %arg2[%c0_2, %c0_3] : memref<16x16xf32, #tpu.memory_space<vmem>>, vector<16x16xf32>
    %cst = arith.constant dense<0.000000e+00> : vector<16x16xf32>
    %3 = tpu.matmul %1, %2, %cst {dimension_numbers = #tpu.dot_dimension_numbers<[1], [0], [0], [1], [0, 0, 1, 1], [], []>} : vector<16x16xf32>, vector<16x16xf32>, vector<16x16xf32> -> vector<16x16xf32>
    %4 = vector.shape_cast %3 : vector<16x16xf32> to vector<2x8x16xf32>
    %c0_4 = arith.constant 0 : index
    %c0_5 = arith.constant 0 : index
    %c0_6 = arith.constant 0 : index
    %5 = vector.load %arg3[%c0_4, %c0_5, %c0_6] : memref<1x1x16xf32, #tpu.memory_space<vmem>>, vector<1x1x16xf32>
    %6 = vector.broadcast %5 : vector<1x1x16xf32> to vector<2x8x16xf32>
    %7 = arith.addf %4, %6 : vector<2x8x16xf32>
    %8 = math.tanh %7 : vector<2x8x16xf32>
    %c0_7 = arith.constant 0 : index
    %c0_8 = arith.constant 0 : index
    %c0_9 = arith.constant 0 : index
    %9 = vector.load %arg4[%c0_7, %c0_8, %c0_9] : memref<1x1x16xf32, #tpu.memory_space<vmem>>, vector<1x1x16xf32>
    %10 = vector.broadcast %9 : vector<1x1x16xf32> to vector<2x8x16xf32>
    %11 = arith.mulf %8, %10 : vector<2x8x16xf32>
    %cst_10 = arith.constant dense<0.000000e+00> : vector<2x8xf32>
    %12 = vector.multi_reduction <add>, %11, %cst_10 [2] : vector<2x8x16xf32> to vector<2x8xf32>
    %cst_11 = arith.constant dense<0xFF800000> : vector<2xf32>
    %13 = vector.multi_reduction <maximumf>, %12, %cst_11 [1] : vector<2x8xf32> to vector<2xf32>
    %14 = vector.shape_cast %13 : vector<2xf32> to vector<2x1xf32>
    %15 = vector.broadcast %14 : vector<2x1xf32> to vector<2x8xf32>
    %16 = arith.subf %12, %15 : vector<2x8xf32>
    %17 = math.exp %16 : vector<2x8xf32>
    %cst_12 = arith.constant dense<0.000000e+00> : vector<2xf32>
    %18 = vector.multi_reduction <add>, %17, %cst_12 [1] : vector<2x8xf32> to vector<2xf32>
    %19 = vector.shape_cast %18 : vector<2xf32> to vector<2x1xf32>
    %20 = tpu.reciprocal %19 {approx = true} : vector<2x1xf32> -> vector<2x1xf32>
    %21 = vector.broadcast %20 : vector<2x1xf32> to vector<2x8xf32>
    %22 = arith.mulf %17, %21 : vector<2x8xf32>
    %23 = vector.shape_cast %22 : vector<2x8xf32> to vector<2x8x1xf32>
    %24 = vector.broadcast %23 : vector<2x8x1xf32> to vector<2x8x16xf32>
    %25 = arith.mulf %24, %0 : vector<2x8x16xf32>
    %cst_13 = arith.constant dense<0.000000e+00> : vector<2x16xf32>
    %26 = vector.multi_reduction <add>, %25, %cst_13 [1] : vector<2x8x16xf32> to vector<2x16xf32>
    %c0_14 = arith.constant 0 : index
    %c0_15 = arith.constant 0 : index
    %27 = vector.load %arg5[%c0_14, %c0_15] : memref<2x16xf32, #tpu.memory_space<vmem>>, vector<2x16xf32>
    tpu.vector_store %arg5[%c0_14, %c0_15], %26 {strides = array<i32>} : memref<2x16xf32, #tpu.memory_space<vmem>>, vector<2x16xf32>,
    return
  }
  func.func @transform_0(%arg0: i32) -> (i32, i32, i32) {
    %c0_i32 = arith.constant 0 : i32
    %c0_i32_0 = arith.constant 0 : i32
    %c0_i32_1 = arith.constant 0 : i32
    return %arg0, %c0_i32, %c0_i32_0 : i32, i32, i32
  }
  func.func @transform_1(%arg0: i32) -> (i32, i32) {
    %c0_i32 = arith.constant 0 : i32
    %c0_i32_0 = arith.constant 0 : i32
    %c0_i32_1 = arith.constant 0 : i32
    return %c0_i32, %c0_i32_0 : i32, i32
  }
  func.func @transform_2(%arg0: i32) -> (i32, i32, i32) {
    %c0_i32 = arith.constant 0 : i32
    %c0_i32_0 = arith.constant 0 : i32
    %c0_i32_1 = arith.constant 0 : i32
    %c0_i32_2 = arith.constant 0 : i32
    return %c0_i32, %c0_i32_0, %c0_i32_1 : i32, i32, i32
  }
  func.func @transform_3(%arg0: i32) -> (i32, i32, i32) {
    %c0_i32 = arith.constant 0 : i32
    %c0_i32_0 = arith.constant 0 : i32
    %c0_i32_1 = arith.constant 0 : i32
    %c0_i32_2 = arith.constant 0 : i32
    return %c0_i32, %c0_i32_0, %c0_i32_1 : i32, i32, i32
  }
  func.func @transform_4(%arg0: i32) -> (i32, i32) {
    %c0_i32 = arith.constant 0 : i32
    %c0_i32_0 = arith.constant 0 : i32
    return %arg0, %c0_i32 : i32, i32
  }
}

</mosaic_0001>

<llo_original>
// kernel: tpu_custom_call.1
$region0: #{tpu_custom_call.1}
  #allocation0 [shape = 'u32[]', space=smem, size = 0x4, offset = 0x4, fixed_abs, tag = 'smem constant byte address 0x4 - core index']
  #allocation1 [shape = 'u32[144,128]{1,0:T(1,128)}', space=vmem, size = 0x12000, scoped, tag = 'internal scratch']
  %s0 = inlined_call_operand.hbm [shape: f32[2,8,16], index: 0, kind: input, shape index: {}]
  %s1 = inlined_call_operand.hbm [shape: f32[16,16], index: 1, kind: input, shape index: {}]
  %s2 = inlined_call_operand.vmem [shape: f32[1,1,16], index: 2, kind: input, shape index: {}]
  %s3 = inlined_call_operand.vmem [shape: f32[1,1,16], index: 3, kind: input, shape index: {}]
  %s4 = inlined_call_operand.hbm [shape: f32[2,16], index: 4, kind: output, shape index: {}]
  %s5 = sld [smem:[#allocation0]]
  $region34: #{tpu_custom_call.1} parent=0
    _
  %s7 = ssub.s32 1, %s5
  %s8 = scalar_select 0, %s7, %s5
  $region1: #{tpu_custom_call.1} parent=0
    #allocation2 [shape = 'u8[8192]{0}', space=vmem, size = 0x2000, scoped, tag = 'input window, operand 0, single buffered']
    #allocation3 [shape = 's32[1]{0}', space=sflag, size = 0x4, scoped, tag = 'scoped memory for tpu_custom_call.1']
    #allocation4 [shape = 's32[1]{0}', space=sflag, size = 0x4, scoped, tag = 'scoped memory for tpu_custom_call.1']
    #allocation5 [shape = 'u8[8192]{0}', space=vmem, size = 0x2000, scoped, tag = 'input window, operand 1, single buffered']
    #allocation6 [shape = 's32[1]{0}', space=sflag, size = 0x4, scoped, tag = 'scoped memory for tpu_custom_call.1']
    #allocation7 [shape = 'u8[1024]{0}', space=vmem, size = 0x400, scoped, tag = 'output window, operand 0, single buffered']
    %9 = vsyncpa [#allocation3], 0
    %10 = vsyncpa [#allocation6], 0
    %11 = vsyncpa [#allocation4], 0
    // Predicated region
    $region2: #{tpu_custom_call.1} parent=1 // pred_check
      _
    $region3: #{tpu_custom_call.1} parent=1 // pred_check_branch
      %13 = sbr.rel (0) target = $region5
    $region4: #{tpu_custom_call.1} parent=1 // pred_region
      %s15 = ssub.s32 256, 256
      %16 = vsyncadd [#allocation3], %s15
      %s17 = sshll.u32 [#allocation2], 4
      %s18 = int_to_ptr.vmem [resolvable:$true] %s17
      %23 = dma.hbm_to_vmem [thread:$0]  %s0, 256, %s18, [#allocation3], 128, 128, 8
    $region5: #{tpu_custom_call.1} parent=1 // pred_fallthru
      _
    // Predicated region
    $region6: #{tpu_custom_call.1} parent=1 // pred_check
      _
    $region7: #{tpu_custom_call.1} parent=1 // pred_check_branch
      %25 = sbr.rel (0) target = $region9
    $region8: #{tpu_custom_call.1} parent=1 // pred_region
      %s27 = ssub.s32 256, 256
      %28 = vsyncadd [#allocation6], %s27
      %s29 = sshll.u32 [#allocation5], 4
      %s30 = int_to_ptr.vmem [resolvable:$true] %s29
      %35 = dma.hbm_to_vmem [thread:$0]  %s1, 256, %s30, [#allocation6], 128, 128, 8
    $region9: #{tpu_custom_call.1} parent=1 // pred_fallthru
      _
    // Predicated region
    $region10: #{tpu_custom_call.1} parent=1 // pred_check
      _
    $region11: #{tpu_custom_call.1} parent=1 // pred_check_branch
      %37 = sbr.rel (0) target = $region13
    $region12: #{tpu_custom_call.1} parent=1 // pred_region
      _
    $region13: #{tpu_custom_call.1} parent=1 // pred_fallthru
      _
    // Predicated region
    $region14: #{tpu_custom_call.1} parent=1 // pred_check
      _
    $region15: #{tpu_custom_call.1} parent=1 // pred_check_branch
      %39 = sbr.rel (0) target = $region17
    $region16: #{tpu_custom_call.1} parent=1 // pred_region
      _
    $region17: #{tpu_custom_call.1} parent=1 // pred_fallthru
      _
    // Predicated region
    $region18: #{tpu_custom_call.1} parent=1 // pred_check
      _
    $region19: #{tpu_custom_call.1} parent=1 // pred_check_branch
      %41 = sbr.rel (0) target = $region21
    $region20: #{tpu_custom_call.1} parent=1 // pred_region
      %42 = dma.done [#allocation3], 256
    $region21: #{tpu_custom_call.1} parent=1 // pred_fallthru
      _
    // Predicated region
    $region22: #{tpu_custom_call.1} parent=1 // pred_check
      _
    $region23: #{tpu_custom_call.1} parent=1 // pred_check_branch
      %44 = sbr.rel (0) target = $region25
    $region24: #{tpu_custom_call.1} parent=1 // pred_region
      %45 = dma.done [#allocation6], 256
    $region25: #{tpu_custom_call.1} parent=1 // pred_fallthru
      _
    %v46 = vld [vmem:[#allocation2] sm:$0xff]
    %v47 = vld [vmem:[#allocation2 + $0x8] sm:$0xff]
    %v48 = vld [vmem:[#allocation5] sm:$0xff]
    %v49 = vld [vmem:[#allocation5 + $0x8] sm:$0xff]
    %vm50 = vcmask 130048
    %v52 = vsel %vm50, %v46, 0
    %v55 = vsel %vm50, %v47, 0
    %57 = vmatprep.subr.mxu0 0.0
    %58 = vmatpush1.msra.mxu0 %v48
    %59 = vmatprep.subr.mxu0 0.0
    %60 = vmatpush1.msra.mxu0 %v49
    %61 = vmatprep.subr.mxu0 0.0
    %62 = vmatpush1.msra.mxu0 0.0
    %63 = vmatprep.subr.mxu0 0.0
    %64 = vmatpush1.msra.mxu0 0.0
    %65 = vmatprep.subr.mxu0 0.0
    %66 = vmatpush1.msra.mxu0 0.0
    %67 = vmatprep.subr.mxu0 0.0
    %68 = vmatpush1.msra.mxu0 0.0
    %69 = vmatprep.subr.mxu0 0.0
    %70 = vmatpush1.msra.mxu0 0.0
    %71 = vmatprep.subr.mxu0 0.0
    %72 = vmatpush1.msra.mxu0 0.0
    %73 = vmatprep.subr.mxu0 0.0
    %74 = vmatpush1.msra.mxu0 0.0
    %75 = vmatprep.subr.mxu0 0.0
    %76 = vmatpush1.msra.mxu0 0.0
    %77 = vmatprep.subr.mxu0 0.0
    %78 = vmatpush1.msra.mxu0 0.0
    %79 = vmatprep.subr.mxu0 0.0
    %80 = vmatpush1.msra.mxu0 0.0
    %81 = vmatprep.subr.mxu0 0.0
    %82 = vmatpush1.msra.mxu0 0.0
    %83 = vmatprep.subr.mxu0 0.0
    %84 = vmatpush1.msra.mxu0 0.0
    %85 = vmatprep.subr.mxu0 0.0
    %86 = vmatpush1.msra.mxu0 0.0
    %87 = vmatprep.subr.mxu0 0.0
    %88 = vmatpush1.msra.mxu0 0.0
    %89 = vmatprep.subr.mxu0 0.0
    %90 = vmatpush1.msra.mxu0 0.0
    %91 = vmatprep.subr.mxu0 0.0
    %92 = vmatpush1.msra.mxu0 0.0
    %93 = vmatprep.subr.mxu0 0.0
    %94 = vmatpush1.msra.mxu0 0.0
    %95 = vmatprep.subr.mxu0 0.0
    %96 = vmatpush1.msra.mxu0 0.0
    %97 = vmatprep.subr.mxu0 0.0
    %98 = vmatpush1.msra.mxu0 0.0
    %99 = vmatprep.subr.mxu0 0.0
    %100 = vmatpush1.msra.mxu0 0.0
    %101 = vmatprep.subr.mxu0 0.0
    %102 = vmatpush1.msra.mxu0 0.0
    %103 = vmatprep.subr.mxu0 0.0
    %104 = vmatpush1.msra.mxu0 0.0
    %105 = vmatprep.subr.mxu0 0.0
    %106 = vmatpush1.msra.mxu0 0.0
    %107 = vmatprep.subr.mxu0 0.0
    %108 = vmatpush1.msra.mxu0 0.0
    %109 = vmatprep.subr.mxu0 0.0
    %110 = vmatpush1.msra.mxu0 0.0
    %111 = vmatprep.subr.mxu0 0.0
    %112 = vmatpush1.msra.mxu0 0.0
    %113 = vmatprep.subr.mxu0 0.0
    %114 = vmatpush1.msra.mxu0 0.0
    %115 = vmatprep.subr.mxu0 0.0
    %116 = vmatpush1.msra.mxu0 0.0
    %117 = vmatprep.subr.mxu0 0.0
    %118 = vmatpush1.msra.mxu0 0.0
    %119 = vmatprep.subr.mxu0 0.0
    %120 = vmatpush1.msra.mxu0 0.0
    %121 = vmatprep.mubr.f32.mxu0 0.0
    %122 = vmatmul.mubr.f32.gmra.mrb[0].mxu0 %v52
    %v123 = vpop.f32.mrb[0].mxu0
    %v124 = vadd.f32 0.0, %v123
    %v125 = vpop.f32.mrb[0].mxu0
    %126 = vmatprep.mubr.f32.mxu0 0.0
    %127 = vmatmul.mubr.f32.gmra.mrb[0].mxu0 %v55
    %v128 = vpop.f32.mrb[0].mxu0
    %v129 = vadd.f32 0.0, %v128
    %v130 = vpop.f32.mrb[0].mxu0
    %131 = vdwg.mxu0
    %v132 = vld [vmem:[%s2] sm:$0x1]
    %v134 = vlaneseq
    %v135 = vshrl.u32 %v134, 7
    %v136 = vsub.s32 0, %v135
    %v137 = vrot.slane %v132, %v136
    %v139 = vadd.f32 %v124, %v137
    %v140 = vadd.f32 %v129, %v137
    %v141 = vtanh.pop %v139
    %v142 = vtanh.pop %v140
    %v143 = vld [vmem:[%s3] sm:$0x1]
    %v145 = vlaneseq
    %v146 = vshrl.u32 %v145, 7
    %v147 = vsub.s32 0, %v146
    %v148 = vrot.slane %v143, %v147
    %v150 = vmul.f32 %v141, %v148
    %v151 = vmul.f32 %v142, %v148
    %v152 = vsel %vm50, %v150, 0.0
    %153 = vadd.xlane.f32.xlu0 %v152
    %v154 = vpop.xlane.xlu0 %153
    %v155 = vsel %vm50, %v151, 0.0
    %156 = vadd.xlane.f32.xlu0 %v155
    %v157 = vpop.xlane.xlu0 %156
    %v160 = vlaneseq
    %v161 = vand.u32 %v160, 127
    %v162 = vlaneseq
    %v163 = vshrl.u32 %v162, 7
    %v164 = vsub.s32 %v161, %v163
    %v165 = vrot.slane %v154, %v164
    %v166 = vlaneseq
    %v167 = vshrl.u32 %v166, 7
    %v168 = vsub.s32 %v161, %v167
    %v169 = vrot.slane %v157, %v168
    %vm170 = vcmask 1041409
    %v171 = vsel %vm170, %v169, %v165
    %vm173 = vcmask 58368
    %v174 = vsel %vm173, %v171, -inf
    %175 = vmax.xlane.f32.xlu0 %v174
    %v176 = vpop.xlane.xlu0 %175
    %v178 = vlaneseq
    %v179 = vshrl.u32 %v178, 7
    %v180 = vsub.s32 0, %v179
    %v181 = vrot.slane %v176, %v180
    %v182 = vlaneseq
    %v183 = vshrl.u32 %v182, 7
    %v184 = vsub.s32 1, %v183
    %v185 = vrot.slane %v176, %v184
    %v188 = vsub.f32 %v154, %v181
    %v189 = vsub.f32 %v157, %v185
    %v190 = vmul.f32 %v188, 1.442695
    %v191 = vpow.pop %v190
    %v192 = vmul.f32 %v189, 1.442695
    %v193 = vpow.pop %v192
    %196 = vset.pattern.permute.xlu0 0
    %197 = vperm.xlu0 %196, %v191
    %v198 = vpop.permute.xlu0 %197
    %199 = vset.pattern.permute.xlu0 0
    %200 = vperm.xlu0 %199, %v193
    %v201 = vpop.permute.xlu0 %200
    %v202 = vlaneseq
    %v203 = vshrl.u32 %v202, 7
    %v204 = vsub.s32 %v161, %v203
    %v205 = vrot.slane %v198, %v204
    %v206 = vlaneseq
    %v207 = vshrl.u32 %v206, 7
    %v208 = vsub.s32 %v161, %v207
    %v209 = vrot.slane %v201, %v208
    %v210 = vsel %vm170, %v209, %v205
    %v212 = vsel %vm173, %v210, 0.0
    %213 = vadd.xlane.f32.xlu0 %v212
    %v214 = vpop.xlane.xlu0 %213
    %v215 = vrcp.pop %v214
    %v217 = vlaneseq
    %v218 = vshrl.u32 %v217, 7
    %v219 = vsub.s32 0, %v218
    %v220 = vrot.slane %v215, %v219
    %v221 = vlaneseq
    %v222 = vshrl.u32 %v221, 7
    %v223 = vsub.s32 1, %v222
    %v224 = vrot.slane %v215, %v223
    %v227 = vmul.f32 %v191, %v220
    %v228 = vmul.f32 %v193, %v224
    %230 = vset.pattern.permute.xlu0 0
    %231 = vperm.xlu0 %230, %v227
    %v232 = vpop.permute.xlu0 %231
    %235 = vset.pattern.permute.xlu0 0
    %236 = vperm.xlu0 %235, %v228
    %v237 = vpop.permute.xlu0 %236
    %v239 = vmul.f32 %v232, %v46
    %v240 = vmul.f32 %v237, %v47
    %v241 = vsel %vm50, %v239, 0.0
    %v242 = vrot.slane %v241, 4
    %v243 = vadd.f32 %v241, %v242
    %v244 = vrot.slane %v243, 2
    %v245 = vadd.f32 %v243, %v244
    %v246 = vrot.slane %v245, 1
    %v247 = vadd.f32 %v245, %v246
    %v248 = vsel %vm50, %v240, 0.0
    %v249 = vrot.slane %v248, 4
    %v250 = vadd.f32 %v248, %v249
    %v251 = vrot.slane %v250, 2
    %v252 = vadd.f32 %v250, %v251
    %v253 = vrot.slane %v252, 1
    %v254 = vadd.f32 %v252, %v253
    %v257 = vsel %vm170, %v254, %v247
    %vm259 = vcmask 123904
    %260 = vst.msk [vmem:[#allocation7] sm:$0x3] %vm259, %v257
    // Predicated region
    $region26: #{tpu_custom_call.1} parent=1 // pred_check
      _
    $region27: #{tpu_custom_call.1} parent=1 // pred_check_branch
      %262 = sbr.rel (0) target = $region29
    $region28: #{tpu_custom_call.1} parent=1 // pred_region
      %s264 = ssub.s32 32, 32
      %265 = vsyncadd [#allocation4], %s264
      %s267 = sshll.u32 [#allocation7], 4
      %s268 = int_to_ptr.vmem [resolvable:$true] %s267
      %270 = dma.vmem_to_hbm [thread:$0]  %s268, 32, %s4, [#allocation4]
    $region29: #{tpu_custom_call.1} parent=1 // pred_fallthru
      _
    // Predicated region
    $region30: #{tpu_custom_call.1} parent=1 // pred_check
      _
    $region31: #{tpu_custom_call.1} parent=1 // pred_check_branch
      %272 = sbr.rel (0) target = $region33
    $region32: #{tpu_custom_call.1} parent=1 // pred_region
      %273 = dma.done [#allocation4], 32
    $region33: #{tpu_custom_call.1} parent=1 // pred_fallthru
      _
    %274 = vsyncpa [#allocation3], 1
    %275 = vsyncpa [#allocation6], 1
    %276 = vsyncpa [#allocation4], 1

</llo_original>
